<compile_context>
chip_gen: v7x
topology: tpu7x:2x2x1
jax: 0.10.0
libtpu: 0.0.40
codegen_flags: <defaults>
</compile_context>

<pallas_src>
import functools
from typing import NamedTuple

import jax
import jax.numpy as jnp
from jax.experimental import pallas as pl
from jax.experimental.pallas import tpu as pltpu

LEAKY_SLOPE = 0.4
LANE = 128     # lane width (last dim)
SUBLANE = 8    # f32 sublane count (second-to-last dim)


def _round_up(x, m):
    return (x + m - 1) // m * m


# --------------------------------------------------------------------------
# Kernel: one (tile_m, P) activation slab flows through all layers in-register
# --------------------------------------------------------------------------
def _fused_decoder_kernel(x_ref, w_ref, b_ref, o_ref, *, num_layers, operand_dtype):
    """x_ref: (tile_m, P) f32, w_ref: (L, P, P) operand_dtype, b_ref: (L, P) f32."""
    h = x_ref[...]                        # f32 (tile_m, P)
    b_all = b_ref[...]                    # hoisted: single (L, P) load
    for i in range(num_layers):
        lhs = h.astype(operand_dtype)     # weights are pre-cast at prepare time
        rhs = w_ref[i]                    # (P, P) slab of the packed weights
        # MXU matmul with f32 accumulation; bias + activation stay in f32.
        y = jnp.dot(lhs, rhs, preferred_element_type=jnp.float32)
        y = y + b_all[i:i + 1, :]         # (1, P) broadcast over rows
        if i < num_layers - 1:
            h = jnp.where(y > 0, y, LEAKY_SLOPE * y)     # LeakyReLU(0.4)
        else:
            h = 1.0 / (1.0 + jnp.exp(-y))                # exact Sigmoid (parity)
    o_ref[...] = h.astype(o_ref.dtype)


# --------------------------------------------------------------------------
# One-time (init-time) parameter preparation — NOT the per-call hot path
# --------------------------------------------------------------------------
class DecoderPrepared(NamedTuple):
    w_pack: jax.Array        # (L, P, P), operand_dtype
    b_pack: jax.Array        # (L, P), f32
    dims: tuple              # (in_dim, hid..., out_dim)
    operand_dtype: jnp.dtype


def prepare_decoder_params(params, *, operand_dtype=jnp.float32):
    """Pad + pack weights/biases once (call at init; reuse across forwards).

    Zero padding is exact: zero rows/cols contribute 0 to every matmul and
    zero bias + LeakyReLU keep padded lanes at 0 between layers, so the valid
    [:M, :out_dim] slice is identical to the unpadded computation.
    """
    num_layers = len(params)
    dims = [params[0][0].shape[0]] + [w.shape[1] for (w, _) in params]
    P = _round_up(max(dims), LANE)
    # TODO(synk): for strongly heterogeneous large dims, per-layer padded
    # widths would avoid quadratic (P,P) blow-up, at the cost of the single
    # packed-weight DMA; all dims here are <= 128 so common P is exact & tiny.
    w_pack = jnp.zeros((num_layers, P, P), operand_dtype)
    b_pack = jnp.zeros((num_layers, P), jnp.float32)
    for i, (w, b) in enumerate(params):
        k, n = w.shape
        w_pack = w_pack.at[i, :k, :n].set(w.astype(operand_dtype))
        b_pack = b_pack.at[i, :n].set(b.astype(jnp.float32))
    return DecoderPrepared(w_pack, b_pack, tuple(int(d) for d in dims),
                           jnp.dtype(operand_dtype))


# --------------------------------------------------------------------------
# VMEM budgeting for tile_m (guards v7x's 64 MiB VMEM / 32 MiB scoped default)
# --------------------------------------------------------------------------
def _vmem_budget_bytes():
    cap = 64 * 1024 * 1024                      # conservative (v7x physical)
    try:
        info = pltpu.get_tpu_info()
        cap = int(getattr(info, "vmem_capacity_bytes", cap))
    except Exception:
        pass
    return max(32 * 1024 * 1024, min(cap // 2, 96 * 1024 * 1024))


def _pick_tile_m(M, P, num_layers, w_bytes_per_elem, vmem_budget):
    m_rounded = _round_up(M, SUBLANE)
    # Grid-invariant VMEM: packed weights + packed bias (single-buffered).
    static_bytes = num_layers * P * (P * w_bytes_per_elem + 4)
    # Per-row cost: x + out tiles, f32, double-buffered each.
    per_row = 2 * 2 * P * 4
    max_rows = max(SUBLANE, (vmem_budget - static_bytes) // per_row)
    max_rows = max(SUBLANE, (max_rows // SUBLANE) * SUBLANE)
    if m_rounded <= max_rows and m_rounded <= 512:
        return int(m_rounded)                   # small batch: one grid step
    # Large batch: multiples of 256 keep the 2x256^2 MXU M-dim full and split
    # the grid evenly across TensorCores under dimension_semantics=("parallel",).
    tile = min(int(max_rows), 1024, int(m_rounded))
    if tile >= 256:
        tile = (tile // 256) * 256
    return int(max(SUBLANE, tile))


# --------------------------------------------------------------------------
# Fused forward (hot path): pad activation, one pallas_call through all layers
# --------------------------------------------------------------------------
def decoder_apply(x, prep: DecoderPrepared, *, tile_m=None):
    M, in_dim = x.shape
    dims = prep.dims
    assert in_dim == dims[0], (in_dim, dims)
    out_dim = dims[-1]
    num_layers, P, _ = prep.w_pack.shape
    w_bytes = jnp.dtype(prep.operand_dtype).itemsize

    vmem_budget = _vmem_budget_bytes()
    if tile_m is None:
        tile_m = _pick_tile_m(M, P, num_layers, w_bytes, vmem_budget)
    tile_m = max(SUBLANE, _round_up(int(tile_m), SUBLANE))
    m_pad = _round_up(M, tile_m)
    grid_m = m_pad // tile_m

    # Only the activation is padded per call (weights were packed at init).
    x_pad = jnp.zeros((m_pad, P), jnp.float32).at[:M, :in_dim].set(x)

    cost = pl.CostEstimate(
        flops=2 * m_pad * P * P * num_layers,
        transcendentals=m_pad * P,                      # sigmoid exp
        bytes_accessed=(4 * 2 * m_pad * P               # x + out (f32)
                        + num_layers * P * P * w_bytes  # packed weights
                        + num_layers * P * 4),          # packed bias
    )

    kernel = functools.partial(
        _fused_decoder_kernel,
        num_layers=num_layers,
        operand_dtype=prep.operand_dtype,
    )

    def _run(single_buffer_invariants):
        # Grid-invariant operands (index_map constant): single-buffer them.
        inv_kwargs = {}
        if single_buffer_invariants:
            inv_kwargs = {"pipeline_mode": pl.Buffered(1)}
        return pl.pallas_call(
            kernel,
            out_shape=jax.ShapeDtypeStruct((m_pad, P), jnp.float32),
            grid=(grid_m,),
            in_specs=[
                pl.BlockSpec((tile_m, P), lambda i: (i, 0)),                   # x tile
                pl.BlockSpec((num_layers, P, P), lambda i: (0, 0, 0),          # weights
                             **inv_kwargs),
                pl.BlockSpec((num_layers, P), lambda i: (0, 0),                # bias
                             **inv_kwargs),
            ],
            out_specs=pl.BlockSpec((tile_m, P), lambda i: (i, 0)),
            compiler_params=pltpu.CompilerParams(
                dimension_semantics=("parallel",),
                vmem_limit_bytes=int(vmem_budget),
            ),
            cost_estimate=cost,
        )(x_pad, prep.w_pack, prep.b_pack)

    try:
        out_pad = _run(True)
    except Exception:
        # Fallback: this jax build rejects pipeline_mode=pl.Buffered(1).
        out_pad = _run(False)

    return out_pad[:M, :out_dim]


def decoder_forward(x, params, *, operand_dtype=jnp.float32, tile_m=None):
    """Convenience wrapper (prepares params every call — NOT the hot path).

    Prefer: prep = prepare_decoder_params(params); decoder_apply(x, prep).
    """
    prep = prepare_decoder_params(params, operand_dtype=operand_dtype)
    return decoder_apply(x, prep, tile_m=tile_m)


# --------------------------------------------------------------------------
# Init + pure-JAX reference (matches the PyTorch module)
# --------------------------------------------------------------------------
def init_decoder_params(layer_dims, key):
    """Xavier-uniform weights (stored as (in, out)), zero biases."""
    params = []
    for i in range(len(layer_dims) - 1):
        fan_in, fan_out = layer_dims[i], layer_dims[i + 1]
        key, sub = jax.random.split(key)
        bound = (6.0 / (fan_in + fan_out)) ** 0.5
        w = jax.random.uniform(
            sub, (fan_in, fan_out), minval=-bound, maxval=bound, dtype=jnp.float32
        )
        b = jnp.zeros((fan_out,), dtype=jnp.float32)
        params.append((w, b))
    return params


def decoder_reference(x, params):
    """Pure-JAX reference for correctness checking."""
    n = len(params)
    for i, (w, b) in enumerate(params):
        y = x @ w + b
        if i < n - 1:
            x = jnp.where(y > 0, y, LEAKY_SLOPE * y)
        else:
            x = 1.0 / (1.0 + jnp.exp(-y))
    return x


if __name__ == "__main__":
    key = jax.random.PRNGKey(0)
    k_x, k_p = jax.random.split(key)

    # hidden_size list the PyTorch module would be constructed with
    layer_dims = [32, 64, 48, 16]
    batch = 8

    x = jax.random.normal(k_x, (batch, layer_dims[0]), dtype=jnp.float32)
    params = init_decoder_params(layer_dims, k_p)
    ref = decoder_reference(x, params)

    # Exact f32 path: prepare once, apply (hot path only pads the activation).
    prep = prepare_decoder_params(params)
    out = jax.block_until_ready(decoder_apply(x, prep))
    assert out.shape == (batch, layer_dims[-1])
    assert jnp.allclose(out, ref, atol=1e-5, rtol=1e-5), (
        float(jnp.max(jnp.abs(out - ref)))
    )

    # bf16-operand path (faster MXU on v5e/v6e/v7x): looser tolerance.
    prep_bf16 = prepare_decoder_params(params, operand_dtype=jnp.bfloat16)
    out_bf16 = jax.block_until_ready(decoder_apply(x, prep_bf16))
    assert out_bf16.shape == (batch, layer_dims[-1])
    assert jnp.allclose(out_bf16, ref, atol=1e-1, rtol=1e-1), (
        float(jnp.max(jnp.abs(out_bf16 - ref)))
    )

    print("KERNEL_OK")
</pallas_src>

<mosaic_0001>
module attributes {stable_mosaic.version = 11 : i64} {
  func.func @_fused_decoder_kernel(%arg0: i32, %arg1: memref<8x128xf32, #tpu.memory_space<vmem>>, %arg2: memref<3x128x128xf32, #tpu.memory_space<vmem>>, %arg3: memref<3x128xf32, #tpu.memory_space<vmem>>, %arg4: memref<8x128xf32, #tpu.memory_space<vmem>>) attributes {dimension_semantics = [#tpu.dimension_semantics<parallel>], iteration_bounds = array<i64: 1>, scalar_prefetch = 0 : i64, scratch_operands = 0 : i64, tpu.core_type = #tpu.core_type<tc>, window_params = [{transform_indices = @transform_0, window_bounds = array<i64: 8, 128>}, {pipeline_mode = #tpu.pipeline_mode<synchronous>, transform_indices = @transform_1, window_bounds = array<i64: 3, 128, 128>}, {pipeline_mode = #tpu.pipeline_mode<synchronous>, transform_indices = @transform_2, window_bounds = array<i64: 3, 128>}, {transform_indices = @transform_3, window_bounds = array<i64: 8, 128>}]} {
    %c0 = arith.constant 0 : index
    %c0_0 = arith.constant 0 : index
    %0 = vector.load %arg1[%c0, %c0_0] : memref<8x128xf32, #tpu.memory_space<vmem>>, vector<8x128xf32>
    %c0_1 = arith.constant 0 : index
    %c0_2 = arith.constant 0 : index
    %1 = vector.load %arg3[%c0_1, %c0_2] : memref<3x128xf32, #tpu.memory_space<vmem>>, vector<3x128xf32>
    %c0_3 = arith.constant 0 : index
    %c0_4 = arith.constant 0 : index
    %c0_5 = arith.constant 0 : index
    %2 = vector.load %arg2[%c0_3, %c0_4, %c0_5] : memref<3x128x128xf32, #tpu.memory_space<vmem>>, vector<1x128x128xf32>
    %3 = vector.shape_cast %2 : vector<1x128x128xf32> to vector<128x128xf32>
    %cst = arith.constant dense<0.000000e+00> : vector<8x128xf32>
    %4 = tpu.matmul %0, %3, %cst {dimension_numbers = #tpu.dot_dimension_numbers<[1], [0], [0], [1], [0, 0, 1, 1], [], []>} : vector<8x128xf32>, vector<128x128xf32>, vector<8x128xf32> -> vector<8x128xf32>
    %5 = vector.extract_strided_slice %1 {offsets = [0, 0], sizes = [1, 128], strides = [1, 1]} : vector<3x128xf32> to vector<1x128xf32>
    %6 = vector.broadcast %5 : vector<1x128xf32> to vector<8x128xf32>
    %7 = arith.addf %4, %6 : vector<8x128xf32>
    %cst_6 = arith.constant 0.000000e+00 : f32
    %8 = vector.broadcast %cst_6 : f32 to vector<8x128xf32>
    %9 = arith.cmpf ogt, %7, %8 : vector<8x128xf32>
    %cst_7 = arith.constant 4.000000e-01 : f32
    %10 = vector.broadcast %cst_7 : f32 to vector<8x128xf32>
    %11 = arith.mulf %10, %7 : vector<8x128xf32>
    %12 = arith.select %9, %7, %11 : vector<8x128xi1>, vector<8x128xf32>
    %c1 = arith.constant 1 : index
    %c0_8 = arith.constant 0 : index
    %c0_9 = arith.constant 0 : index
    %13 = vector.load %arg2[%c1, %c0_8, %c0_9] : memref<3x128x128xf32, #tpu.memory_space<vmem>>, vector<1x128x128xf32>
    %14 = vector.shape_cast %13 : vector<1x128x128xf32> to vector<128x128xf32>
    %cst_10 = arith.constant dense<0.000000e+00> : vector<8x128xf32>
    %15 = tpu.matmul %12, %14, %cst_10 {dimension_numbers = #tpu.dot_dimension_numbers<[1], [0], [0], [1], [0, 0, 1, 1], [], []>} : vector<8x128xf32>, vector<128x128xf32>, vector<8x128xf32> -> vector<8x128xf32>
    %16 = vector.extract_strided_slice %1 {offsets = [1, 0], sizes = [1, 128], strides = [1, 1]} : vector<3x128xf32> to vector<1x128xf32>
    %17 = vector.broadcast %16 : vector<1x128xf32> to vector<8x128xf32>
    %18 = arith.addf %15, %17 : vector<8x128xf32>
    %cst_11 = arith.constant 0.000000e+00 : f32
    %19 = vector.broadcast %cst_11 : f32 to vector<8x128xf32>
    %20 = arith.cmpf ogt, %18, %19 : vector<8x128xf32>
    %cst_12 = arith.constant 4.000000e-01 : f32
    %21 = vector.broadcast %cst_12 : f32 to vector<8x128xf32>
    %22 = arith.mulf %21, %18 : vector<8x128xf32>
    %23 = arith.select %20, %18, %22 : vector<8x128xi1>, vector<8x128xf32>
    %c2 = arith.constant 2 : index
    %c0_13 = arith.constant 0 : index
    %c0_14 = arith.constant 0 : index
    %24 = vector.load %arg2[%c2, %c0_13, %c0_14] : memref<3x128x128xf32, #tpu.memory_space<vmem>>, vector<1x128x128xf32>
    %25 = vector.shape_cast %24 : vector<1x128x128xf32> to vector<128x128xf32>
    %cst_15 = arith.constant dense<0.000000e+00> : vector<8x128xf32>
    %26 = tpu.matmul %23, %25, %cst_15 {dimension_numbers = #tpu.dot_dimension_numbers<[1], [0], [0], [1], [0, 0, 1, 1], [], []>} : vector<8x128xf32>, vector<128x128xf32>, vector<8x128xf32> -> vector<8x128xf32>
    %27 = vector.extract_strided_slice %1 {offsets = [2, 0], sizes = [1, 128], strides = [1, 1]} : vector<3x128xf32> to vector<1x128xf32>
    %28 = vector.broadcast %27 : vector<1x128xf32> to vector<8x128xf32>
    %29 = arith.addf %26, %28 : vector<8x128xf32>
    %cst_16 = arith.constant 0.000000e+00 : f32
    %30 = vector.broadcast %cst_16 : f32 to vector<8x128xf32>
    %31 = arith.subf %30, %29 : vector<8x128xf32>
    %32 = math.exp %31 : vector<8x128xf32>
    %cst_17 = arith.constant 1.000000e+00 : f32
    %33 = vector.broadcast %cst_17 : f32 to vector<8x128xf32>
    %34 = arith.addf %33, %32 : vector<8x128xf32>
    %cst_18 = arith.constant 1.000000e+00 : f32
    %35 = vector.broadcast %cst_18 : f32 to vector<8x128xf32>
    %36 = arith.divf %35, %34 : vector<8x128xf32>
    %c0_19 = arith.constant 0 : index
    %c0_20 = arith.constant 0 : index
    %37 = vector.load %arg4[%c0_19, %c0_20] : memref<8x128xf32, #tpu.memory_space<vmem>>, vector<8x128xf32>
    tpu.vector_store %arg4[%c0_19, %c0_20], %36 {strides = array<i32>} : memref<8x128xf32, #tpu.memory_space<vmem>>, vector<8x128xf32>,
    return
  }
  func.func @transform_0(%arg0: i32) -> (i32, i32) {
    %c0_i32 = arith.constant 0 : i32
    %c0_i32_0 = arith.constant 0 : i32
    return %arg0, %c0_i32 : i32, i32
  }
  func.func @transform_1(%arg0: i32) -> (i32, i32, i32) {
    %c0_i32 = arith.constant 0 : i32
    %c0_i32_0 = arith.constant 0 : i32
    %c0_i32_1 = arith.constant 0 : i32
    %c0_i32_2 = arith.constant 0 : i32
    return %c0_i32, %c0_i32_0, %c0_i32_1 : i32, i32, i32
  }
  func.func @transform_2(%arg0: i32) -> (i32, i32) {
    %c0_i32 = arith.constant 0 : i32
    %c0_i32_0 = arith.constant 0 : i32
    %c0_i32_1 = arith.constant 0 : i32
    return %c0_i32, %c0_i32_0 : i32, i32
  }
  func.func @transform_3(%arg0: i32) -> (i32, i32) {
    %c0_i32 = arith.constant 0 : i32
    %c0_i32_0 = arith.constant 0 : i32
    return %arg0, %c0_i32 : i32, i32
  }
}

module attributes {stable_mosaic.version = 11 : i64} {
  func.func @_fused_decoder_kernel(%arg0: i32, %arg1: memref<8x128xf32, #tpu.memory_space<vmem>>, %arg2: memref<3x128x128xf32, #tpu.memory_space<vmem>>, %arg3: memref<3x128xf32, #tpu.memory_space<vmem>>, %arg4: memref<8x128xf32, #tpu.memory_space<vmem>>) attributes {dimension_semantics = [#tpu.dimension_semantics<parallel>], iteration_bounds = array<i64: 1>, scalar_prefetch = 0 : i64, scratch_operands = 0 : i64, tpu.core_type = #tpu.core_type<tc>, window_params = [{transform_indices = @transform_0, window_bounds = array<i64: 8, 128>}, {pipeline_mode = #tpu.pipeline_mode<synchronous>, transform_indices = @transform_1, window_bounds = array<i64: 3, 128, 128>}, {pipeline_mode = #tpu.pipeline_mode<synchronous>, transform_indices = @transform_2, window_bounds = array<i64: 3, 128>}, {transform_indices = @transform_3, window_bounds = array<i64: 8, 128>}]} {
    %c0 = arith.constant 0 : index
    %c0_0 = arith.constant 0 : index
    %0 = vector.load %arg1[%c0, %c0_0] : memref<8x128xf32, #tpu.memory_space<vmem>>, vector<8x128xf32>
    %c0_1 = arith.constant 0 : index
    %c0_2 = arith.constant 0 : index
    %1 = vector.load %arg3[%c0_1, %c0_2] : memref<3x128xf32, #tpu.memory_space<vmem>>, vector<3x128xf32>
    %c0_3 = arith.constant 0 : index
    %c0_4 = arith.constant 0 : index
    %c0_5 = arith.constant 0 : index
    %2 = vector.load %arg2[%c0_3, %c0_4, %c0_5] : memref<3x128x128xf32, #tpu.memory_space<vmem>>, vector<1x128x128xf32>
    %3 = vector.shape_cast %2 : vector<1x128x128xf32> to vector<128x128xf32>
    %cst = arith.constant dense<0.000000e+00> : vector<8x128xf32>
    %4 = tpu.matmul %0, %3, %cst {dimension_numbers = #tpu.dot_dimension_numbers<[1], [0], [0], [1], [0, 0, 1, 1], [], []>} : vector<8x128xf32>, vector<128x128xf32>, vector<8x128xf32> -> vector<8x128xf32>
    %5 = vector.extract_strided_slice %1 {offsets = [0, 0], sizes = [1, 128], strides = [1, 1]} : vector<3x128xf32> to vector<1x128xf32>
    %6 = vector.broadcast %5 : vector<1x128xf32> to vector<8x128xf32>
    %7 = arith.addf %4, %6 : vector<8x128xf32>
    %cst_6 = arith.constant 0.000000e+00 : f32
    %8 = vector.broadcast %cst_6 : f32 to vector<8x128xf32>
    %9 = arith.cmpf ogt, %7, %8 : vector<8x128xf32>
    %cst_7 = arith.constant 4.000000e-01 : f32
    %10 = vector.broadcast %cst_7 : f32 to vector<8x128xf32>
    %11 = arith.mulf %10, %7 : vector<8x128xf32>
    %12 = arith.select %9, %7, %11 : vector<8x128xi1>, vector<8x128xf32>
    %c1 = arith.constant 1 : index
    %c0_8 = arith.constant 0 : index
    %c0_9 = arith.constant 0 : index
    %13 = vector.load %arg2[%c1, %c0_8, %c0_9] : memref<3x128x128xf32, #tpu.memory_space<vmem>>, vector<1x128x128xf32>
    %14 = vector.shape_cast %13 : vector<1x128x128xf32> to vector<128x128xf32>
    %cst_10 = arith.constant dense<0.000000e+00> : vector<8x128xf32>
    %15 = tpu.matmul %12, %14, %cst_10 {dimension_numbers = #tpu.dot_dimension_numbers<[1], [0], [0], [1], [0, 0, 1, 1], [], []>} : vector<8x128xf32>, vector<128x128xf32>, vector<8x128xf32> -> vector<8x128xf32>
    %16 = vector.extract_strided_slice %1 {offsets = [1, 0], sizes = [1, 128], strides = [1, 1]} : vector<3x128xf32> to vector<1x128xf32>
    %17 = vector.broadcast %16 : vector<1x128xf32> to vector<8x128xf32>
    %18 = arith.addf %15, %17 : vector<8x128xf32>
    %cst_11 = arith.constant 0.000000e+00 : f32
    %19 = vector.broadcast %cst_11 : f32 to vector<8x128xf32>
    %20 = arith.cmpf ogt, %18, %19 : vector<8x128xf32>
    %cst_12 = arith.constant 4.000000e-01 : f32
    %21 = vector.broadcast %cst_12 : f32 to vector<8x128xf32>
    %22 = arith.mulf %21, %18 : vector<8x128xf32>
    %23 = arith.select %20, %18, %22 : vector<8x128xi1>, vector<8x128xf32>
    %c2 = arith.constant 2 : index
    %c0_13 = arith.constant 0 : index
    %c0_14 = arith.constant 0 : index
    %24 = vector.load %arg2[%c2, %c0_13, %c0_14] : memref<3x128x128xf32, #tpu.memory_space<vmem>>, vector<1x128x128xf32>
    %25 = vector.shape_cast %24 : vector<1x128x128xf32> to vector<128x128xf32>
    %cst_15 = arith.constant dense<0.000000e+00> : vector<8x128xf32>
    %26 = tpu.matmul %23, %25, %cst_15 {dimension_numbers = #tpu.dot_dimension_numbers<[1], [0], [0], [1], [0, 0, 1, 1], [], []>} : vector<8x128xf32>, vector<128x128xf32>, vector<8x128xf32> -> vector<8x128xf32>
    %27 = vector.extract_strided_slice %1 {offsets = [2, 0], sizes = [1, 128], strides = [1, 1]} : vector<3x128xf32> to vector<1x128xf32>
    %28 = vector.broadcast %27 : vector<1x128xf32> to vector<8x128xf32>
    %29 = arith.addf %26, %28 : vector<8x128xf32>
    %cst_16 = arith.constant 0.000000e+00 : f32
    %30 = vector.broadcast %cst_16 : f32 to vector<8x128xf32>
    %31 = arith.subf %30, %29 : vector<8x128xf32>
    %32 = math.exp %31 : vector<8x128xf32>
    %cst_17 = arith.constant 1.000000e+00 : f32
    %33 = vector.broadcast %cst_17 : f32 to vector<8x128xf32>
    %34 = arith.addf %33, %32 : vector<8x128xf32>
    %cst_18 = arith.constant 1.000000e+00 : f32
    %35 = vector.broadcast %cst_18 : f32 to vector<8x128xf32>
    %36 = arith.divf %35, %34 : vector<8x128xf32>
    %c0_19 = arith.constant 0 : index
    %c0_20 = arith.constant 0 : index
    %37 = vector.load %arg4[%c0_19, %c0_20] : memref<8x128xf32, #tpu.memory_space<vmem>>, vector<8x128xf32>
    tpu.vector_store %arg4[%c0_19, %c0_20], %36 {strides = array<i32>} : memref<8x128xf32, #tpu.memory_space<vmem>>, vector<8x128xf32>,
    return
  }
  func.func @transform_0(%arg0: i32) -> (i32, i32) {
    %c0_i32 = arith.constant 0 : i32
    %c0_i32_0 = arith.constant 0 : i32
    return %arg0, %c0_i32 : i32, i32
  }
  func.func @transform_1(%arg0: i32) -> (i32, i32, i32) {
    %c0_i32 = arith.constant 0 : i32
    %c0_i32_0 = arith.constant 0 : i32
    %c0_i32_1 = arith.constant 0 : i32
    %c0_i32_2 = arith.constant 0 : i32
    return %c0_i32, %c0_i32_0, %c0_i32_1 : i32, i32, i32
  }
  func.func @transform_2(%arg0: i32) -> (i32, i32) {
    %c0_i32 = arith.constant 0 : i32
    %c0_i32_0 = arith.constant 0 : i32
    %c0_i32_1 = arith.constant 0 : i32
    return %c0_i32, %c0_i32_0 : i32, i32
  }
  func.func @transform_3(%arg0: i32) -> (i32, i32) {
    %c0_i32 = arith.constant 0 : i32
    %c0_i32_0 = arith.constant 0 : i32
    return %arg0, %c0_i32 : i32, i32
  }
}

</mosaic_0001>

<llo_original>
// kernel: tpu_custom_call.1
$region0: #{tpu_custom_call.1}
  #allocation0 [shape = 'u32[]', space=smem, size = 0x4, offset = 0x4, fixed_abs, tag = 'smem constant byte address 0x4 - core index']
  #allocation1 [shape = 'u32[144,128]{1,0:T(1,128)}', space=vmem, size = 0x12000, scoped, tag = 'internal scratch']
  %s0 = inlined_call_operand.hbm [shape: f32[8,128], index: 0, kind: input, shape index: {}]
  %s1 = inlined_call_operand.hbm [shape: f32[3,128,128], index: 1, kind: input, shape index: {}]
  %s2 = inlined_call_operand.vmem [shape: f32[3,128], index: 2, kind: input, shape index: {}]
  %s3 = inlined_call_operand.hbm [shape: f32[8,128], index: 3, kind: output, shape index: {}]
  %s4 = sld [smem:[#allocation0]]
  $region30: #{tpu_custom_call.1} parent=0
    _
  %s6 = ssub.s32 1, %s4
  %s7 = scalar_select 0, %s6, %s4
  $region1: #{tpu_custom_call.1} parent=0
    #allocation2 [shape = 'u8[4096]{0}', space=vmem, size = 0x1000, scoped, tag = 'input window, operand 0, single buffered']
    #allocation3 [shape = 's32[1]{0}', space=sflag, size = 0x4, scoped, tag = 'scoped memory for tpu_custom_call.1']
    #allocation4 [shape = 's32[1]{0}', space=sflag, size = 0x4, scoped, tag = 'scoped memory for tpu_custom_call.1']
    #allocation5 [shape = 'u8[196608]{0}', space=vmem, size = 0x30000, scoped, tag = 'input window, operand 1, single buffered']
    #allocation6 [shape = 's32[1]{0}', space=sflag, size = 0x4, scoped, tag = 'scoped memory for tpu_custom_call.1']
    #allocation7 [shape = 'u8[4096]{0}', space=vmem, size = 0x1000, scoped, tag = 'output window, operand 0, single buffered']
    %8 = vsyncpa [#allocation3], 0
    %9 = vsyncpa [#allocation6], 0
    %10 = vsyncpa [#allocation4], 0
    // Predicated region
    $region2: #{tpu_custom_call.1} parent=1 // pred_check
      _
    $region3: #{tpu_custom_call.1} parent=1 // pred_check_branch
      %12 = sbr.rel (0) target = $region5
    $region4: #{tpu_custom_call.1} parent=1 // pred_region
      %s14 = ssub.s32 128, 128
      %15 = vsyncadd [#allocation3], %s14
      %s17 = sshll.u32 [#allocation2], 4
      %s18 = int_to_ptr.vmem [resolvable:$true] %s17
      %20 = dma.hbm_to_vmem [thread:$0]  %s0, 128, %s18, [#allocation3]
    $region5: #{tpu_custom_call.1} parent=1 // pred_fallthru
      _
    // Predicated region
    $region6: #{tpu_custom_call.1} parent=1 // pred_check
      _
    $region7: #{tpu_custom_call.1} parent=1 // pred_check_branch
      %22 = sbr.rel (0) target = $region9
    $region8: #{tpu_custom_call.1} parent=1 // pred_region
      %s24 = ssub.s32 6144, 6144
      %25 = vsyncadd [#allocation6], %s24
      %s26 = sshll.u32 [#allocation5], 4
      %s27 = int_to_ptr.vmem [resolvable:$true] %s26
      %32 = dma.hbm_to_vmem [thread:$0]  %s1, 6144, %s27, [#allocation6], 128, 128, 8
    $region9: #{tpu_custom_call.1} parent=1 // pred_fallthru
      _
    // Predicated region
    $region10: #{tpu_custom_call.1} parent=1 // pred_check
      _
    $region11: #{tpu_custom_call.1} parent=1 // pred_check_branch
      %34 = sbr.rel (0) target = $region13
    $region12: #{tpu_custom_call.1} parent=1 // pred_region
      _
    $region13: #{tpu_custom_call.1} parent=1 // pred_fallthru
      _
    // Predicated region
    $region14: #{tpu_custom_call.1} parent=1 // pred_check
      _
    $region15: #{tpu_custom_call.1} parent=1 // pred_check_branch
      %36 = sbr.rel (0) target = $region17
    $region16: #{tpu_custom_call.1} parent=1 // pred_region
      %37 = dma.done [#allocation3], 128
    $region17: #{tpu_custom_call.1} parent=1 // pred_fallthru
      _
    // Predicated region
    $region18: #{tpu_custom_call.1} parent=1 // pred_check
      _
    $region19: #{tpu_custom_call.1} parent=1 // pred_check_branch
      %39 = sbr.rel (0) target = $region21
    $region20: #{tpu_custom_call.1} parent=1 // pred_region
      %40 = dma.done [#allocation6], 6144
    $region21: #{tpu_custom_call.1} parent=1 // pred_fallthru
      _
    %v41 = vld [vmem:[#allocation2] sm:$0xff]
    %v42 = vld [vmem:[%s2] sm:$0x7]
    %v43 = vld [vmem:[#allocation5] sm:$0xff]
    %v44 = vld [vmem:[#allocation5 + $0x8] sm:$0xff]
    %v45 = vld [vmem:[#allocation5 + $0x10] sm:$0xff]
    %v46 = vld [vmem:[#allocation5 + $0x18] sm:$0xff]
    %v47 = vld [vmem:[#allocation5 + $0x20] sm:$0xff]
    %v48 = vld [vmem:[#allocation5 + $0x28] sm:$0xff]
    %v49 = vld [vmem:[#allocation5 + $0x30] sm:$0xff]
    %v50 = vld [vmem:[#allocation5 + $0x38] sm:$0xff]
    %v51 = vld [vmem:[#allocation5 + $0x40] sm:$0xff]
    %v52 = vld [vmem:[#allocation5 + $0x48] sm:$0xff]
    %v53 = vld [vmem:[#allocation5 + $0x50] sm:$0xff]
    %v54 = vld [vmem:[#allocation5 + $0x58] sm:$0xff]
    %v55 = vld [vmem:[#allocation5 + $0x60] sm:$0xff]
    %v56 = vld [vmem:[#allocation5 + $0x68] sm:$0xff]
    %v57 = vld [vmem:[#allocation5 + $0x70] sm:$0xff]
    %v58 = vld [vmem:[#allocation5 + $0x78] sm:$0xff]
    %v59 = vlaneseq
    %v60 = vshrl.u32 %v59, 7
    %v61 = vsub.s32 0, %v60
    %v62 = vrot.slane %v42, %v61
    %63 = vmatprep.subr.mxu0 0.0
    %64 = vmatpush1.msra.mxu0 %v43
    %65 = vmatprep.subr.mxu0 0.0
    %66 = vmatpush1.msra.mxu0 %v44
    %67 = vmatprep.subr.mxu0 0.0
    %68 = vmatpush1.msra.mxu0 %v45
    %69 = vmatprep.subr.mxu0 0.0
    %70 = vmatpush1.msra.mxu0 %v46
    %71 = vmatprep.subr.mxu0 0.0
    %72 = vmatpush1.msra.mxu0 %v47
    %73 = vmatprep.subr.mxu0 0.0
    %74 = vmatpush1.msra.mxu0 %v48
    %75 = vmatprep.subr.mxu0 0.0
    %76 = vmatpush1.msra.mxu0 %v49
    %77 = vmatprep.subr.mxu0 0.0
    %78 = vmatpush1.msra.mxu0 %v50
    %79 = vmatprep.subr.mxu0 0.0
    %80 = vmatpush1.msra.mxu0 %v51
    %81 = vmatprep.subr.mxu0 0.0
    %82 = vmatpush1.msra.mxu0 %v52
    %83 = vmatprep.subr.mxu0 0.0
    %84 = vmatpush1.msra.mxu0 %v53
    %85 = vmatprep.subr.mxu0 0.0
    %86 = vmatpush1.msra.mxu0 %v54
    %87 = vmatprep.subr.mxu0 0.0
    %88 = vmatpush1.msra.mxu0 %v55
    %89 = vmatprep.subr.mxu0 0.0
    %90 = vmatpush1.msra.mxu0 %v56
    %91 = vmatprep.subr.mxu0 0.0
    %92 = vmatpush1.msra.mxu0 %v57
    %93 = vmatprep.subr.mxu0 0.0
    %94 = vmatpush1.msra.mxu0 %v58
    %95 = vmatprep.subr.mxu0 0.0
    %96 = vmatpush1.msra.mxu0 0.0
    %97 = vmatprep.subr.mxu0 0.0
    %98 = vmatpush1.msra.mxu0 0.0
    %99 = vmatprep.subr.mxu0 0.0
    %100 = vmatpush1.msra.mxu0 0.0
    %101 = vmatprep.subr.mxu0 0.0
    %102 = vmatpush1.msra.mxu0 0.0
    %103 = vmatprep.subr.mxu0 0.0
    %104 = vmatpush1.msra.mxu0 0.0
    %105 = vmatprep.subr.mxu0 0.0
    %106 = vmatpush1.msra.mxu0 0.0
    %107 = vmatprep.subr.mxu0 0.0
    %108 = vmatpush1.msra.mxu0 0.0
    %109 = vmatprep.subr.mxu0 0.0
    %110 = vmatpush1.msra.mxu0 0.0
    %111 = vmatprep.subr.mxu0 0.0
    %112 = vmatpush1.msra.mxu0 0.0
    %113 = vmatprep.subr.mxu0 0.0
    %114 = vmatpush1.msra.mxu0 0.0
    %115 = vmatprep.subr.mxu0 0.0
    %116 = vmatpush1.msra.mxu0 0.0
    %117 = vmatprep.subr.mxu0 0.0
    %118 = vmatpush1.msra.mxu0 0.0
    %119 = vmatprep.subr.mxu0 0.0
    %120 = vmatpush1.msra.mxu0 0.0
    %121 = vmatprep.subr.mxu0 0.0
    %122 = vmatpush1.msra.mxu0 0.0
    %123 = vmatprep.subr.mxu0 0.0
    %124 = vmatpush1.msra.mxu0 0.0
    %125 = vmatprep.subr.mxu0 0.0
    %126 = vmatpush1.msra.mxu0 0.0
    %127 = vmatprep.mubr.f32.mxu0 0.0
    %128 = vmatmul.mubr.f32.gmra.mrb[0].mxu0 %v41
    %v129 = vpop.f32.mrb[0].mxu0
    %v130 = vadd.f32 %v62, %v129
    %v131 = vpop.f32.mrb[0].mxu0
    %132 = vdwg.mxu0
    %vm133 = vcmp.gt.f32.partialorder %v130, 0.0
    %v134 = vmul.f32 %v130, 0.4
    %v135 = vsel %vm133, %v130, %v134
    %s136 = scalar_lea.vmem [#allocation5], 128
    %v137 = vld [vmem:[%s136] sm:$0xff]
    %v138 = vld [vmem:[%s136 + $0x8] sm:$0xff]
    %v139 = vld [vmem:[%s136 + $0x10] sm:$0xff]
    %v140 = vld [vmem:[%s136 + $0x18] sm:$0xff]
    %v141 = vld [vmem:[%s136 + $0x20] sm:$0xff]
    %v142 = vld [vmem:[%s136 + $0x28] sm:$0xff]
    %v143 = vld [vmem:[%s136 + $0x30] sm:$0xff]
    %v144 = vld [vmem:[%s136 + $0x38] sm:$0xff]
    %v145 = vld [vmem:[%s136 + $0x40] sm:$0xff]
    %v146 = vld [vmem:[%s136 + $0x48] sm:$0xff]
    %v147 = vld [vmem:[%s136 + $0x50] sm:$0xff]
    %v148 = vld [vmem:[%s136 + $0x58] sm:$0xff]
    %v149 = vld [vmem:[%s136 + $0x60] sm:$0xff]
    %v150 = vld [vmem:[%s136 + $0x68] sm:$0xff]
    %v151 = vld [vmem:[%s136 + $0x70] sm:$0xff]
    %v152 = vld [vmem:[%s136 + $0x78] sm:$0xff]
    %v153 = vlaneseq
    %v154 = vshrl.u32 %v153, 7
    %v155 = vsub.s32 1, %v154
    %v156 = vrot.slane %v42, %v155
    %157 = vmatprep.subr.mxu0 0.0
    %158 = vmatpush1.msra.mxu0 %v137
    %159 = vmatprep.subr.mxu0 0.0
    %160 = vmatpush1.msra.mxu0 %v138
    %161 = vmatprep.subr.mxu0 0.0
    %162 = vmatpush1.msra.mxu0 %v139
    %163 = vmatprep.subr.mxu0 0.0
    %164 = vmatpush1.msra.mxu0 %v140
    %165 = vmatprep.subr.mxu0 0.0
    %166 = vmatpush1.msra.mxu0 %v141
    %167 = vmatprep.subr.mxu0 0.0
    %168 = vmatpush1.msra.mxu0 %v142
    %169 = vmatprep.subr.mxu0 0.0
    %170 = vmatpush1.msra.mxu0 %v143
    %171 = vmatprep.subr.mxu0 0.0
    %172 = vmatpush1.msra.mxu0 %v144
    %173 = vmatprep.subr.mxu0 0.0
    %174 = vmatpush1.msra.mxu0 %v145
    %175 = vmatprep.subr.mxu0 0.0
    %176 = vmatpush1.msra.mxu0 %v146
    %177 = vmatprep.subr.mxu0 0.0
    %178 = vmatpush1.msra.mxu0 %v147
    %179 = vmatprep.subr.mxu0 0.0
    %180 = vmatpush1.msra.mxu0 %v148
    %181 = vmatprep.subr.mxu0 0.0
    %182 = vmatpush1.msra.mxu0 %v149
    %183 = vmatprep.subr.mxu0 0.0
    %184 = vmatpush1.msra.mxu0 %v150
    %185 = vmatprep.subr.mxu0 0.0
    %186 = vmatpush1.msra.mxu0 %v151
    %187 = vmatprep.subr.mxu0 0.0
    %188 = vmatpush1.msra.mxu0 %v152
    %189 = vmatprep.subr.mxu0 0.0
    %190 = vmatpush1.msra.mxu0 0.0
    %191 = vmatprep.subr.mxu0 0.0
    %192 = vmatpush1.msra.mxu0 0.0
    %193 = vmatprep.subr.mxu0 0.0
    %194 = vmatpush1.msra.mxu0 0.0
    %195 = vmatprep.subr.mxu0 0.0
    %196 = vmatpush1.msra.mxu0 0.0
    %197 = vmatprep.subr.mxu0 0.0
    %198 = vmatpush1.msra.mxu0 0.0
    %199 = vmatprep.subr.mxu0 0.0
    %200 = vmatpush1.msra.mxu0 0.0
    %201 = vmatprep.subr.mxu0 0.0
    %202 = vmatpush1.msra.mxu0 0.0
    %203 = vmatprep.subr.mxu0 0.0
    %204 = vmatpush1.msra.mxu0 0.0
    %205 = vmatprep.subr.mxu0 0.0
    %206 = vmatpush1.msra.mxu0 0.0
    %207 = vmatprep.subr.mxu0 0.0
    %208 = vmatpush1.msra.mxu0 0.0
    %209 = vmatprep.subr.mxu0 0.0
    %210 = vmatpush1.msra.mxu0 0.0
    %211 = vmatprep.subr.mxu0 0.0
    %212 = vmatpush1.msra.mxu0 0.0
    %213 = vmatprep.subr.mxu0 0.0
    %214 = vmatpush1.msra.mxu0 0.0
    %215 = vmatprep.subr.mxu0 0.0
    %216 = vmatpush1.msra.mxu0 0.0
    %217 = vmatprep.subr.mxu0 0.0
    %218 = vmatpush1.msra.mxu0 0.0
    %219 = vmatprep.subr.mxu0 0.0
    %220 = vmatpush1.msra.mxu0 0.0
    %221 = vmatprep.mubr.f32.mxu0 0.0
    %222 = vmatmul.mubr.f32.gmra.mrb[0].mxu0 %v135
    %v223 = vpop.f32.mrb[0].mxu0
    %v224 = vadd.f32 %v156, %v223
    %v225 = vpop.f32.mrb[0].mxu0
    %226 = vdwg.mxu0
    %vm227 = vcmp.gt.f32.partialorder %v224, 0.0
    %v228 = vmul.f32 %v224, 0.4
    %v229 = vsel %vm227, %v224, %v228
    %s230 = scalar_lea.vmem [#allocation5], 256
    %v231 = vld [vmem:[%s230] sm:$0xff]
    %v232 = vld [vmem:[%s230 + $0x8] sm:$0xff]
    %v233 = vld [vmem:[%s230 + $0x10] sm:$0xff]
    %v234 = vld [vmem:[%s230 + $0x18] sm:$0xff]
    %v235 = vld [vmem:[%s230 + $0x20] sm:$0xff]
    %v236 = vld [vmem:[%s230 + $0x28] sm:$0xff]
    %v237 = vld [vmem:[%s230 + $0x30] sm:$0xff]
    %v238 = vld [vmem:[%s230 + $0x38] sm:$0xff]
    %v239 = vld [vmem:[%s230 + $0x40] sm:$0xff]
    %v240 = vld [vmem:[%s230 + $0x48] sm:$0xff]
    %v241 = vld [vmem:[%s230 + $0x50] sm:$0xff]
    %v242 = vld [vmem:[%s230 + $0x58] sm:$0xff]
    %v243 = vld [vmem:[%s230 + $0x60] sm:$0xff]
    %v244 = vld [vmem:[%s230 + $0x68] sm:$0xff]
    %v245 = vld [vmem:[%s230 + $0x70] sm:$0xff]
    %v246 = vld [vmem:[%s230 + $0x78] sm:$0xff]
    %v247 = vlaneseq
    %v248 = vshrl.u32 %v247, 7
    %v249 = vsub.s32 2, %v248
    %v250 = vrot.slane %v42, %v249
    %251 = vmatprep.subr.mxu0 0.0
    %252 = vmatpush1.msra.mxu0 %v231
    %253 = vmatprep.subr.mxu0 0.0
    %254 = vmatpush1.msra.mxu0 %v232
    %255 = vmatprep.subr.mxu0 0.0
    %256 = vmatpush1.msra.mxu0 %v233
    %257 = vmatprep.subr.mxu0 0.0
    %258 = vmatpush1.msra.mxu0 %v234
    %259 = vmatprep.subr.mxu0 0.0
    %260 = vmatpush1.msra.mxu0 %v235
    %261 = vmatprep.subr.mxu0 0.0
    %262 = vmatpush1.msra.mxu0 %v236
    %263 = vmatprep.subr.mxu0 0.0
    %264 = vmatpush1.msra.mxu0 %v237
    %265 = vmatprep.subr.mxu0 0.0
    %266 = vmatpush1.msra.mxu0 %v238
    %267 = vmatprep.subr.mxu0 0.0
    %268 = vmatpush1.msra.mxu0 %v239
    %269 = vmatprep.subr.mxu0 0.0
    %270 = vmatpush1.msra.mxu0 %v240
    %271 = vmatprep.subr.mxu0 0.0
    %272 = vmatpush1.msra.mxu0 %v241
    %273 = vmatprep.subr.mxu0 0.0
    %274 = vmatpush1.msra.mxu0 %v242
    %275 = vmatprep.subr.mxu0 0.0
    %276 = vmatpush1.msra.mxu0 %v243
    %277 = vmatprep.subr.mxu0 0.0
    %278 = vmatpush1.msra.mxu0 %v244
    %279 = vmatprep.subr.mxu0 0.0
    %280 = vmatpush1.msra.mxu0 %v245
    %281 = vmatprep.subr.mxu0 0.0
    %282 = vmatpush1.msra.mxu0 %v246
    %283 = vmatprep.subr.mxu0 0.0
    %284 = vmatpush1.msra.mxu0 0.0
    %285 = vmatprep.subr.mxu0 0.0
    %286 = vmatpush1.msra.mxu0 0.0
    %287 = vmatprep.subr.mxu0 0.0
    %288 = vmatpush1.msra.mxu0 0.0
    %289 = vmatprep.subr.mxu0 0.0
    %290 = vmatpush1.msra.mxu0 0.0
    %291 = vmatprep.subr.mxu0 0.0
    %292 = vmatpush1.msra.mxu0 0.0
    %293 = vmatprep.subr.mxu0 0.0
    %294 = vmatpush1.msra.mxu0 0.0
    %295 = vmatprep.subr.mxu0 0.0
    %296 = vmatpush1.msra.mxu0 0.0
    %297 = vmatprep.subr.mxu0 0.0
    %298 = vmatpush1.msra.mxu0 0.0
    %299 = vmatprep.subr.mxu0 0.0
    %300 = vmatpush1.msra.mxu0 0.0
    %301 = vmatprep.subr.mxu0 0.0
    %302 = vmatpush1.msra.mxu0 0.0
    %303 = vmatprep.subr.mxu0 0.0
    %304 = vmatpush1.msra.mxu0 0.0
    %305 = vmatprep.subr.mxu0 0.0
    %306 = vmatpush1.msra.mxu0 0.0
    %307 = vmatprep.subr.mxu0 0.0
    %308 = vmatpush1.msra.mxu0 0.0
    %309 = vmatprep.subr.mxu0 0.0
    %310 = vmatpush1.msra.mxu0 0.0
    %311 = vmatprep.subr.mxu0 0.0
    %312 = vmatpush1.msra.mxu0 0.0
    %313 = vmatprep.subr.mxu0 0.0
    %314 = vmatpush1.msra.mxu0 0.0
    %315 = vmatprep.mubr.f32.mxu0 0.0
    %316 = vmatmul.mubr.f32.gmra.mrb[0].mxu0 %v229
    %v317 = vpop.f32.mrb[0].mxu0
    %v318 = vadd.f32 %v250, %v317
    %v319 = vpop.f32.mrb[0].mxu0
    %320 = vdwg.mxu0
    %v321 = vsub.f32 0.0, %v318
    %v322 = vmul.f32 %v321, 1.442695
    %v323 = vpow.pop %v322
    %v324 = vadd.f32 %v323, 1.0
    %v325 = vrcp.pop %v324
    %v326 = vmul.f32 1.0, %v325
    %327 = vst [vmem:[#allocation7] sm:$0xff] %v326
    // Predicated region
    $region22: #{tpu_custom_call.1} parent=1 // pred_check
      _
    $region23: #{tpu_custom_call.1} parent=1 // pred_check_branch
      %329 = sbr.rel (0) target = $region25
    $region24: #{tpu_custom_call.1} parent=1 // pred_region
      %s331 = ssub.s32 128, 128
      %332 = vsyncadd [#allocation4], %s331
      %s334 = sshll.u32 [#allocation7], 4
      %s335 = int_to_ptr.vmem [resolvable:$true] %s334
      %337 = dma.vmem_to_hbm [thread:$0]  %s335, 128, %s3, [#allocation4]
    $region25: #{tpu_custom_call.1} parent=1 // pred_fallthru
      _
    // Predicated region
    $region26: #{tpu_custom_call.1} parent=1 // pred_check
      _
    $region27: #{tpu_custom_call.1} parent=1 // pred_check_branch
      %339 = sbr.rel (0) target = $region29
    $region28: #{tpu_custom_call.1} parent=1 // pred_region
      %340 = dma.done [#allocation4], 128
    $region29: #{tpu_custom_call.1} parent=1 // pred_fallthru
      _
    %341 = vsyncpa [#allocation3], 1
    %342 = vsyncpa [#allocation6], 1
    %343 = vsyncpa [#allocation4], 1

// kernel: tpu_custom_call.1
$region0: #{tpu_custom_call.1}
  #allocation0 [shape = 'u32[]', space=smem, size = 0x4, offset = 0x4, fixed_abs, tag = 'smem constant byte address 0x4 - core index']
  #allocation1 [shape = 'u32[144,128]{1,0:T(1,128)}', space=vmem, size = 0x12000, scoped, tag = 'internal scratch']
  %s0 = inlined_call_operand.hbm [shape: f32[8,128], index: 0, kind: input, shape index: {}]
  %s1 = inlined_call_operand.hbm [shape: f32[3,128,128], index: 1, kind: input, shape index: {}]
  %s2 = inlined_call_operand.vmem [shape: f32[3,128], index: 2, kind: input, shape index: {}]
  %s3 = inlined_call_operand.hbm [shape: f32[8,128], index: 3, kind: output, shape index: {}]
  %s4 = sld [smem:[#allocation0]]
  $region30: #{tpu_custom_call.1} parent=0
    _
  %s6 = ssub.s32 1, %s4
  %s7 = scalar_select 0, %s6, %s4
  $region1: #{tpu_custom_call.1} parent=0
    #allocation2 [shape = 'u8[4096]{0}', space=vmem, size = 0x1000, scoped, tag = 'input window, operand 0, single buffered']
    #allocation3 [shape = 's32[1]{0}', space=sflag, size = 0x4, scoped, tag = 'scoped memory for tpu_custom_call.1']
    #allocation4 [shape = 's32[1]{0}', space=sflag, size = 0x4, scoped, tag = 'scoped memory for tpu_custom_call.1']
    #allocation5 [shape = 'u8[196608]{0}', space=vmem, size = 0x30000, scoped, tag = 'input window, operand 1, single buffered']
    #allocation6 [shape = 's32[1]{0}', space=sflag, size = 0x4, scoped, tag = 'scoped memory for tpu_custom_call.1']
    #allocation7 [shape = 'u8[4096]{0}', space=vmem, size = 0x1000, scoped, tag = 'output window, operand 0, single buffered']
    %8 = vsyncpa [#allocation3], 0
    %9 = vsyncpa [#allocation6], 0
    %10 = vsyncpa [#allocation4], 0
    // Predicated region
    $region2: #{tpu_custom_call.1} parent=1 // pred_check
      _
    $region3: #{tpu_custom_call.1} parent=1 // pred_check_branch
      %12 = sbr.rel (0) target = $region5
    $region4: #{tpu_custom_call.1} parent=1 // pred_region
      %s14 = ssub.s32 128, 128
      %15 = vsyncadd [#allocation3], %s14
      %s17 = sshll.u32 [#allocation2], 4
      %s18 = int_to_ptr.vmem [resolvable:$true] %s17
      %20 = dma.hbm_to_vmem [thread:$0]  %s0, 128, %s18, [#allocation3]
    $region5: #{tpu_custom_call.1} parent=1 // pred_fallthru
      _
    // Predicated region
    $region6: #{tpu_custom_call.1} parent=1 // pred_check
      _
    $region7: #{tpu_custom_call.1} parent=1 // pred_check_branch
      %22 = sbr.rel (0) target = $region9
    $region8: #{tpu_custom_call.1} parent=1 // pred_region
      %s24 = ssub.s32 6144, 6144
      %25 = vsyncadd [#allocation6], %s24
      %s26 = sshll.u32 [#allocation5], 4
      %s27 = int_to_ptr.vmem [resolvable:$true] %s26
      %32 = dma.hbm_to_vmem [thread:$0]  %s1, 6144, %s27, [#allocation6], 128, 128, 8
    $region9: #{tpu_custom_call.1} parent=1 // pred_fallthru
      _
    // Predicated region
    $region10: #{tpu_custom_call.1} parent=1 // pred_check
      _
    $region11: #{tpu_custom_call.1} parent=1 // pred_check_branch
      %34 = sbr.rel (0) target = $region13
    $region12: #{tpu_custom_call.1} parent=1 // pred_region
      _
    $region13: #{tpu_custom_call.1} parent=1 // pred_fallthru
      _
    // Predicated region
    $region14: #{tpu_custom_call.1} parent=1 // pred_check
      _
    $region15: #{tpu_custom_call.1} parent=1 // pred_check_branch
      %36 = sbr.rel (0) target = $region17
    $region16: #{tpu_custom_call.1} parent=1 // pred_region
      %37 = dma.done [#allocation3], 128
    $region17: #{tpu_custom_call.1} parent=1 // pred_fallthru
      _
    // Predicated region
    $region18: #{tpu_custom_call.1} parent=1 // pred_check
      _
    $region19: #{tpu_custom_call.1} parent=1 // pred_check_branch
      %39 = sbr.rel (0) target = $region21
    $region20: #{tpu_custom_call.1} parent=1 // pred_region
      %40 = dma.done [#allocation6], 6144
    $region21: #{tpu_custom_call.1} parent=1 // pred_fallthru
      _
    %v41 = vld [vmem:[#allocation2] sm:$0xff]
    %v42 = vld [vmem:[%s2] sm:$0x7]
    %v43 = vld [vmem:[#allocation5] sm:$0xff]
    %v44 = vld [vmem:[#allocation5 + $0x8] sm:$0xff]
    %v45 = vld [vmem:[#allocation5 + $0x10] sm:$0xff]
    %v46 = vld [vmem:[#allocation5 + $0x18] sm:$0xff]
    %v47 = vld [vmem:[#allocation5 + $0x20] sm:$0xff]
    %v48 = vld [vmem:[#allocation5 + $0x28] sm:$0xff]
    %v49 = vld [vmem:[#allocation5 + $0x30] sm:$0xff]
    %v50 = vld [vmem:[#allocation5 + $0x38] sm:$0xff]
    %v51 = vld [vmem:[#allocation5 + $0x40] sm:$0xff]
    %v52 = vld [vmem:[#allocation5 + $0x48] sm:$0xff]
    %v53 = vld [vmem:[#allocation5 + $0x50] sm:$0xff]
    %v54 = vld [vmem:[#allocation5 + $0x58] sm:$0xff]
    %v55 = vld [vmem:[#allocation5 + $0x60] sm:$0xff]
    %v56 = vld [vmem:[#allocation5 + $0x68] sm:$0xff]
    %v57 = vld [vmem:[#allocation5 + $0x70] sm:$0xff]
    %v58 = vld [vmem:[#allocation5 + $0x78] sm:$0xff]
    %v59 = vlaneseq
    %v60 = vshrl.u32 %v59, 7
    %v61 = vsub.s32 0, %v60
    %v62 = vrot.slane %v42, %v61
    %63 = vmatprep.subr.mxu0 0.0
    %64 = vmatpush1.msra.mxu0 %v43
    %65 = vmatprep.subr.mxu0 0.0
    %66 = vmatpush1.msra.mxu0 %v44
    %67 = vmatprep.subr.mxu0 0.0
    %68 = vmatpush1.msra.mxu0 %v45
    %69 = vmatprep.subr.mxu0 0.0
    %70 = vmatpush1.msra.mxu0 %v46
    %71 = vmatprep.subr.mxu0 0.0
    %72 = vmatpush1.msra.mxu0 %v47
    %73 = vmatprep.subr.mxu0 0.0
    %74 = vmatpush1.msra.mxu0 %v48
    %75 = vmatprep.subr.mxu0 0.0
    %76 = vmatpush1.msra.mxu0 %v49
    %77 = vmatprep.subr.mxu0 0.0
    %78 = vmatpush1.msra.mxu0 %v50
    %79 = vmatprep.subr.mxu0 0.0
    %80 = vmatpush1.msra.mxu0 %v51
    %81 = vmatprep.subr.mxu0 0.0
    %82 = vmatpush1.msra.mxu0 %v52
    %83 = vmatprep.subr.mxu0 0.0
    %84 = vmatpush1.msra.mxu0 %v53
    %85 = vmatprep.subr.mxu0 0.0
    %86 = vmatpush1.msra.mxu0 %v54
    %87 = vmatprep.subr.mxu0 0.0
    %88 = vmatpush1.msra.mxu0 %v55
    %89 = vmatprep.subr.mxu0 0.0
    %90 = vmatpush1.msra.mxu0 %v56
    %91 = vmatprep.subr.mxu0 0.0
    %92 = vmatpush1.msra.mxu0 %v57
    %93 = vmatprep.subr.mxu0 0.0
    %94 = vmatpush1.msra.mxu0 %v58
    %95 = vmatprep.subr.mxu0 0.0
    %96 = vmatpush1.msra.mxu0 0.0
    %97 = vmatprep.subr.mxu0 0.0
    %98 = vmatpush1.msra.mxu0 0.0
    %99 = vmatprep.subr.mxu0 0.0
    %100 = vmatpush1.msra.mxu0 0.0
    %101 = vmatprep.subr.mxu0 0.0
    %102 = vmatpush1.msra.mxu0 0.0
    %103 = vmatprep.subr.mxu0 0.0
    %104 = vmatpush1.msra.mxu0 0.0
    %105 = vmatprep.subr.mxu0 0.0
    %106 = vmatpush1.msra.mxu0 0.0
    %107 = vmatprep.subr.mxu0 0.0
    %108 = vmatpush1.msra.mxu0 0.0
    %109 = vmatprep.subr.mxu0 0.0
    %110 = vmatpush1.msra.mxu0 0.0
    %111 = vmatprep.subr.mxu0 0.0
    %112 = vmatpush1.msra.mxu0 0.0
    %113 = vmatprep.subr.mxu0 0.0
    %114 = vmatpush1.msra.mxu0 0.0
    %115 = vmatprep.subr.mxu0 0.0
    %116 = vmatpush1.msra.mxu0 0.0
    %117 = vmatprep.subr.mxu0 0.0
    %118 = vmatpush1.msra.mxu0 0.0
    %119 = vmatprep.subr.mxu0 0.0
    %120 = vmatpush1.msra.mxu0 0.0
    %121 = vmatprep.subr.mxu0 0.0
    %122 = vmatpush1.msra.mxu0 0.0
    %123 = vmatprep.subr.mxu0 0.0
    %124 = vmatpush1.msra.mxu0 0.0
    %125 = vmatprep.subr.mxu0 0.0
    %126 = vmatpush1.msra.mxu0 0.0
    %127 = vmatprep.mubr.f32.mxu0 0.0
    %128 = vmatmul.mubr.f32.gmra.mrb[0].mxu0 %v41
    %v129 = vpop.f32.mrb[0].mxu0
    %v130 = vadd.f32 %v62, %v129
    %v131 = vpop.f32.mrb[0].mxu0
    %132 = vdwg.mxu0
    %vm133 = vcmp.gt.f32.partialorder %v130, 0.0
    %v134 = vmul.f32 %v130, 0.4
    %v135 = vsel %vm133, %v130, %v134
    %s136 = scalar_lea.vmem [#allocation5], 128
    %v137 = vld [vmem:[%s136] sm:$0xff]
    %v138 = vld [vmem:[%s136 + $0x8] sm:$0xff]
    %v139 = vld [vmem:[%s136 + $0x10] sm:$0xff]
    %v140 = vld [vmem:[%s136 + $0x18] sm:$0xff]
    %v141 = vld [vmem:[%s136 + $0x20] sm:$0xff]
    %v142 = vld [vmem:[%s136 + $0x28] sm:$0xff]
    %v143 = vld [vmem:[%s136 + $0x30] sm:$0xff]
    %v144 = vld [vmem:[%s136 + $0x38] sm:$0xff]
    %v145 = vld [vmem:[%s136 + $0x40] sm:$0xff]
    %v146 = vld [vmem:[%s136 + $0x48] sm:$0xff]
    %v147 = vld [vmem:[%s136 + $0x50] sm:$0xff]
    %v148 = vld [vmem:[%s136 + $0x58] sm:$0xff]
    %v149 = vld [vmem:[%s136 + $0x60] sm:$0xff]
    %v150 = vld [vmem:[%s136 + $0x68] sm:$0xff]
    %v151 = vld [vmem:[%s136 + $0x70] sm:$0xff]
    %v152 = vld [vmem:[%s136 + $0x78] sm:$0xff]
    %v153 = vlaneseq
    %v154 = vshrl.u32 %v153, 7
    %v155 = vsub.s32 1, %v154
    %v156 = vrot.slane %v42, %v155
    %157 = vmatprep.subr.mxu0 0.0
    %158 = vmatpush1.msra.mxu0 %v137
    %159 = vmatprep.subr.mxu0 0.0
    %160 = vmatpush1.msra.mxu0 %v138
    %161 = vmatprep.subr.mxu0 0.0
    %162 = vmatpush1.msra.mxu0 %v139
    %163 = vmatprep.subr.mxu0 0.0
    %164 = vmatpush1.msra.mxu0 %v140
    %165 = vmatprep.subr.mxu0 0.0
    %166 = vmatpush1.msra.mxu0 %v141
    %167 = vmatprep.subr.mxu0 0.0
    %168 = vmatpush1.msra.mxu0 %v142
    %169 = vmatprep.subr.mxu0 0.0
    %170 = vmatpush1.msra.mxu0 %v143
    %171 = vmatprep.subr.mxu0 0.0
    %172 = vmatpush1.msra.mxu0 %v144
    %173 = vmatprep.subr.mxu0 0.0
    %174 = vmatpush1.msra.mxu0 %v145
    %175 = vmatprep.subr.mxu0 0.0
    %176 = vmatpush1.msra.mxu0 %v146
    %177 = vmatprep.subr.mxu0 0.0
    %178 = vmatpush1.msra.mxu0 %v147
    %179 = vmatprep.subr.mxu0 0.0
    %180 = vmatpush1.msra.mxu0 %v148
    %181 = vmatprep.subr.mxu0 0.0
    %182 = vmatpush1.msra.mxu0 %v149
    %183 = vmatprep.subr.mxu0 0.0
    %184 = vmatpush1.msra.mxu0 %v150
    %185 = vmatprep.subr.mxu0 0.0
    %186 = vmatpush1.msra.mxu0 %v151
    %187 = vmatprep.subr.mxu0 0.0
    %188 = vmatpush1.msra.mxu0 %v152
    %189 = vmatprep.subr.mxu0 0.0
    %190 = vmatpush1.msra.mxu0 0.0
    %191 = vmatprep.subr.mxu0 0.0
    %192 = vmatpush1.msra.mxu0 0.0
    %193 = vmatprep.subr.mxu0 0.0
    %194 = vmatpush1.msra.mxu0 0.0
    %195 = vmatprep.subr.mxu0 0.0
    %196 = vmatpush1.msra.mxu0 0.0
    %197 = vmatprep.subr.mxu0 0.0
    %198 = vmatpush1.msra.mxu0 0.0
    %199 = vmatprep.subr.mxu0 0.0
    %200 = vmatpush1.msra.mxu0 0.0
    %201 = vmatprep.subr.mxu0 0.0
    %202 = vmatpush1.msra.mxu0 0.0
    %203 = vmatprep.subr.mxu0 0.0
    %204 = vmatpush1.msra.mxu0 0.0
    %205 = vmatprep.subr.mxu0 0.0
    %206 = vmatpush1.msra.mxu0 0.0
    %207 = vmatprep.subr.mxu0 0.0
    %208 = vmatpush1.msra.mxu0 0.0
    %209 = vmatprep.subr.mxu0 0.0
    %210 = vmatpush1.msra.mxu0 0.0
    %211 = vmatprep.subr.mxu0 0.0
    %212 = vmatpush1.msra.mxu0 0.0
    %213 = vmatprep.subr.mxu0 0.0
    %214 = vmatpush1.msra.mxu0 0.0
    %215 = vmatprep.subr.mxu0 0.0
    %216 = vmatpush1.msra.mxu0 0.0
    %217 = vmatprep.subr.mxu0 0.0
    %218 = vmatpush1.msra.mxu0 0.0
    %219 = vmatprep.subr.mxu0 0.0
    %220 = vmatpush1.msra.mxu0 0.0
    %221 = vmatprep.mubr.f32.mxu0 0.0
    %222 = vmatmul.mubr.f32.gmra.mrb[0].mxu0 %v135
    %v223 = vpop.f32.mrb[0].mxu0
    %v224 = vadd.f32 %v156, %v223
    %v225 = vpop.f32.mrb[0].mxu0
    %226 = vdwg.mxu0
    %vm227 = vcmp.gt.f32.partialorder %v224, 0.0
    %v228 = vmul.f32 %v224, 0.4
    %v229 = vsel %vm227, %v224, %v228
    %s230 = scalar_lea.vmem [#allocation5], 256
    %v231 = vld [vmem:[%s230] sm:$0xff]
    %v232 = vld [vmem:[%s230 + $0x8] sm:$0xff]
    %v233 = vld [vmem:[%s230 + $0x10] sm:$0xff]
    %v234 = vld [vmem:[%s230 + $0x18] sm:$0xff]
    %v235 = vld [vmem:[%s230 + $0x20] sm:$0xff]
    %v236 = vld [vmem:[%s230 + $0x28] sm:$0xff]
    %v237 = vld [vmem:[%s230 + $0x30] sm:$0xff]
    %v238 = vld [vmem:[%s230 + $0x38] sm:$0xff]
    %v239 = vld [vmem:[%s230 + $0x40] sm:$0xff]
    %v240 = vld [vmem:[%s230 + $0x48] sm:$0xff]
    %v241 = vld [vmem:[%s230 + $0x50] sm:$0xff]
    %v242 = vld [vmem:[%s230 + $0x58] sm:$0xff]
    %v243 = vld [vmem:[%s230 + $0x60] sm:$0xff]
    %v244 = vld [vmem:[%s230 + $0x68] sm:$0xff]
    %v245 = vld [vmem:[%s230 + $0x70] sm:$0xff]
    %v246 = vld [vmem:[%s230 + $0x78] sm:$0xff]
    %v247 = vlaneseq
    %v248 = vshrl.u32 %v247, 7
    %v249 = vsub.s32 2, %v248
    %v250 = vrot.slane %v42, %v249
    %251 = vmatprep.subr.mxu0 0.0
    %252 = vmatpush1.msra.mxu0 %v231
    %253 = vmatprep.subr.mxu0 0.0
    %254 = vmatpush1.msra.mxu0 %v232
    %255 = vmatprep.subr.mxu0 0.0
    %256 = vmatpush1.msra.mxu0 %v233
    %257 = vmatprep.subr.mxu0 0.0
    %258 = vmatpush1.msra.mxu0 %v234
    %259 = vmatprep.subr.mxu0 0.0
    %260 = vmatpush1.msra.mxu0 %v235
    %261 = vmatprep.subr.mxu0 0.0
    %262 = vmatpush1.msra.mxu0 %v236
    %263 = vmatprep.subr.mxu0 0.0
    %264 = vmatpush1.msra.mxu0 %v237
    %265 = vmatprep.subr.mxu0 0.0
    %266 = vmatpush1.msra.mxu0 %v238
    %267 = vmatprep.subr.mxu0 0.0
    %268 = vmatpush1.msra.mxu0 %v239
    %269 = vmatprep.subr.mxu0 0.0
    %270 = vmatpush1.msra.mxu0 %v240
    %271 = vmatprep.subr.mxu0 0.0
    %272 = vmatpush1.msra.mxu0 %v241
    %273 = vmatprep.subr.mxu0 0.0
    %274 = vmatpush1.msra.mxu0 %v242
    %275 = vmatprep.subr.mxu0 0.0
    %276 = vmatpush1.msra.mxu0 %v243
    %277 = vmatprep.subr.mxu0 0.0
    %278 = vmatpush1.msra.mxu0 %v244
    %279 = vmatprep.subr.mxu0 0.0
    %280 = vmatpush1.msra.mxu0 %v245
    %281 = vmatprep.subr.mxu0 0.0
    %282 = vmatpush1.msra.mxu0 %v246
    %283 = vmatprep.subr.mxu0 0.0
    %284 = vmatpush1.msra.mxu0 0.0
    %285 = vmatprep.subr.mxu0 0.0
    %286 = vmatpush1.msra.mxu0 0.0
    %287 = vmatprep.subr.mxu0 0.0
    %288 = vmatpush1.msra.mxu0 0.0
    %289 = vmatprep.subr.mxu0 0.0
    %290 = vmatpush1.msra.mxu0 0.0
    %291 = vmatprep.subr.mxu0 0.0
    %292 = vmatpush1.msra.mxu0 0.0
    %293 = vmatprep.subr.mxu0 0.0
    %294 = vmatpush1.msra.mxu0 0.0
    %295 = vmatprep.subr.mxu0 0.0
    %296 = vmatpush1.msra.mxu0 0.0
    %297 = vmatprep.subr.mxu0 0.0
    %298 = vmatpush1.msra.mxu0 0.0
    %299 = vmatprep.subr.mxu0 0.0
    %300 = vmatpush1.msra.mxu0 0.0
    %301 = vmatprep.subr.mxu0 0.0
    %302 = vmatpush1.msra.mxu0 0.0
    %303 = vmatprep.subr.mxu0 0.0
    %304 = vmatpush1.msra.mxu0 0.0
    %305 = vmatprep.subr.mxu0 0.0
    %306 = vmatpush1.msra.mxu0 0.0
    %307 = vmatprep.subr.mxu0 0.0
    %308 = vmatpush1.msra.mxu0 0.0
    %309 = vmatprep.subr.mxu0 0.0
    %310 = vmatpush1.msra.mxu0 0.0
    %311 = vmatprep.subr.mxu0 0.0
    %312 = vmatpush1.msra.mxu0 0.0
    %313 = vmatprep.subr.mxu0 0.0
    %314 = vmatpush1.msra.mxu0 0.0
    %315 = vmatprep.mubr.f32.mxu0 0.0
    %316 = vmatmul.mubr.f32.gmra.mrb[0].mxu0 %v229
    %v317 = vpop.f32.mrb[0].mxu0
    %v318 = vadd.f32 %v250, %v317
    %v319 = vpop.f32.mrb[0].mxu0
    %320 = vdwg.mxu0
    %v321 = vsub.f32 0.0, %v318
    %v322 = vmul.f32 %v321, 1.442695
    %v323 = vpow.pop %v322
    %v324 = vadd.f32 %v323, 1.0
    %v325 = vrcp.pop %v324
    %v326 = vmul.f32 1.0, %v325
    %327 = vst [vmem:[#allocation7] sm:$0xff] %v326
    // Predicated region
    $region22: #{tpu_custom_call.1} parent=1 // pred_check
      _
    $region23: #{tpu_custom_call.1} parent=1 // pred_check_branch
      %329 = sbr.rel (0) target = $region25
    $region24: #{tpu_custom_call.1} parent=1 // pred_region
      %s331 = ssub.s32 128, 128
      %332 = vsyncadd [#allocation4], %s331
      %s334 = sshll.u32 [#allocation7], 4
      %s335 = int_to_ptr.vmem [resolvable:$true] %s334
      %337 = dma.vmem_to_hbm [thread:$0]  %s335, 128, %s3, [#allocation4]
    $region25: #{tpu_custom_call.1} parent=1 // pred_fallthru
      _
    // Predicated region
    $region26: #{tpu_custom_call.1} parent=1 // pred_check
      _
    $region27: #{tpu_custom_call.1} parent=1 // pred_check_branch
      %339 = sbr.rel (0) target = $region29
    $region28: #{tpu_custom_call.1} parent=1 // pred_region
      %340 = dma.done [#allocation4], 128
    $region29: #{tpu_custom_call.1} parent=1 // pred_fallthru
      _
    %341 = vsyncpa [#allocation3], 1
    %342 = vsyncpa [#allocation6], 1
    %343 = vsyncpa [#allocation4], 1

</llo_original>
